<compile_context>
chip_gen: v6e
topology: v6e:2x2x1
jax: 0.10.0
libtpu: 0.0.40
codegen_flags: <defaults>
</compile_context>

<pallas_src>
import numpy as np
import jax
import jax.numpy as jnp
from jax.experimental import pallas as pl
from jax.experimental.pallas import tpu as pltpu


def _round_up(x, m):
    return (x + m - 1) // m * m


def _stft_matmul_kernel(frames_ref, basis_ref, out_ref):
    # frames_ref: (TM, n_fft) bf16   basis_ref: (n_fft, W_pad) bf16
    # out_ref:    (TM, W_pad) f32   — lane-dense store (W_pad multiple of 128)
    out_ref[...] = jnp.dot(
        frames_ref[...], basis_ref[...],
        preferred_element_type=jnp.float32,
    )


class STFT:
    """JAX/Pallas replica of the PyTorch STFT module (module defaults)."""

    def __init__(self, sample_rate, win_length=25, hop_length=10, n_fft=400,
                 normalized_stft=False, center=True, pad_mode="constant",
                 onesided=True, compute_dtype=jnp.bfloat16):
        # TODO(synk): normalized_stft=True, center=False and non-constant pad
        # modes are not wired; the module defaults are implemented exactly.
        assert not normalized_stft and center and pad_mode == "constant" and onesided
        self.sample_rate = sample_rate
        self.n_fft = int(n_fft)
        self.win_length = int(round(sample_rate / 1000.0 * win_length))
        self.hop_length = int(round(sample_rate / 1000.0 * hop_length))
        assert self.win_length <= self.n_fft
        self.n_freq = self.n_fft // 2 + 1
        self.compute_dtype = compute_dtype

        # hamming window (torch default: periodic), zero-padded centered to n_fft
        n = np.arange(self.win_length, dtype=np.float64)
        win = 0.54 - 0.46 * np.cos(2.0 * np.pi * n / self.win_length)
        w_full = np.zeros(self.n_fft, dtype=np.float64)
        left = (self.n_fft - self.win_length) // 2
        w_full[left:left + self.win_length] = win

        # One-sided real DFT basis with the window folded in:
        #   re[k,f] =  w[k]*cos(2*pi*k*f/n_fft),  im[k,f] = -w[k]*sin(2*pi*k*f/n_fft)
        # Columns laid out [re (F, padded to F_pad) | im (F, padded to F_pad)] so the
        # (…, 2, F_pad) view of the output is a pure reshape (free) and the final
        # slice+transpose fuse into one pass.
        self._f_pad = _round_up(self.n_freq, 128)
        self._w_pad = 2 * self._f_pad
        k = np.arange(self.n_fft, dtype=np.float64)[:, None]
        f = np.arange(self.n_freq, dtype=np.float64)[None, :]
        ang = 2.0 * np.pi * k * f / self.n_fft
        basis = np.zeros((self.n_fft, self._w_pad), dtype=np.float64)
        basis[:, :self.n_freq] = w_full[:, None] * np.cos(ang)
        basis[:, self._f_pad:self._f_pad + self.n_freq] = -(w_full[:, None] * np.sin(ang))
        self.basis = jnp.asarray(basis, dtype=self.compute_dtype)  # (n_fft, W_pad)

    def __call__(self, x):
        or_ndim = x.ndim
        if or_ndim == 3:
            B, T, C = x.shape
            sig = jnp.transpose(x, (0, 2, 1)).reshape(B * C, T)
        else:
            B, T = x.shape
            C = None
            sig = x

        n_fft, hop = self.n_fft, self.hop_length
        pad = n_fft // 2
        # center padding (zeros); cast once to the bf16 compute dtype (signal-sized,
        # cheap) so the big frames gather reads/writes half the bytes.
        sig = jnp.pad(sig, ((0, 0), (pad, pad))).astype(self.compute_dtype)
        n_frames = 1 + (T + 2 * pad - n_fft) // hop
        n_rows = sig.shape[0]

        # ---- M-axis tiling: one flat "parallel" grid axis over all (row, frame).
        TARGET = 1024                                   # frames per MXU tile (cap)
        n_tiles_row = -(-n_frames // TARGET)            # tiles needed per signal row
        ft = _round_up(-(-n_frames // n_tiles_row), 8)  # per-row tile height
        nf_pad = ft * n_tiles_row                       # padded frames per row
        if n_tiles_row == 1:
            # Merge whole rows into one tile so short rows still fill the MXU M dim,
            # keeping >=2 grid steps for megacore / 2-TC sharding when possible.
            rows_per_tile = 1
            for d in range(n_rows, 0, -1):
                if n_rows % d == 0 and d * nf_pad <= TARGET and n_rows // d >= 2:
                    rows_per_tile = d
                    break
            tm = rows_per_tile * nf_pad
        else:
            tm = ft
        m_total = n_rows * nf_pad
        num_tiles = m_total // tm

        # Frame extraction with the frame-axis padding folded into the gather index
        # (clamped starts) — no extra jnp.pad pass over the frames tensor. Clamped
        # tail frames hold duplicate data and are sliced off after the kernel.
        starts = np.minimum(np.arange(nf_pad), n_frames - 1).astype(np.int32) * hop
        idx = starts[:, None] + np.arange(n_fft, dtype=np.int32)[None, :]
        frames = sig[:, idx]                              # (n_rows, nf_pad, n_fft) bf16
        frames = frames.reshape(m_total, n_fft)           # free (contiguous) view

        w_pad = self._w_pad
        out = pl.pallas_call(
            _stft_matmul_kernel,
            out_shape=jax.ShapeDtypeStruct((m_total, w_pad), jnp.float32),
            grid=(num_tiles,),
            in_specs=[
                pl.BlockSpec((tm, n_fft), lambda i: (i, 0)),
                # Basis is VMEM-resident across the whole grid (constant index_map).
                # TODO(synk): pipeline_mode=pl.Buffered(1) would drop its second
                # buffer for extra v7x VMEM headroom; unnecessary at these tile sizes.
                pl.BlockSpec((n_fft, w_pad), lambda i: (0, 0)),
            ],
            out_specs=pl.BlockSpec((tm, w_pad), lambda i: (i, 0)),
            compiler_params=pltpu.CompilerParams(
                dimension_semantics=("parallel",),
                # Per-step working set (2x frames tile + 2x out tile + basis) is
                # ~6 MiB at TM=1024 with bf16 inputs; 32 MiB is safe on every
                # generation (v7x scoped default is 32 MiB of 64 MiB physical).
                vmem_limit_bytes=32 * 1024 * 1024,
            ),
        )(frames, self.basis)

        F, F_pad = self.n_freq, self._f_pad
        # [re | im] halves are each a 128-multiple wide, so this reshape is a free
        # view; the slice + transpose below fuse into a single XLA copy.
        if or_ndim == 3:
            out = out.reshape(B, C, nf_pad, 2, F_pad)
            out = out[:, :, :n_frames, :, :F]             # drop pad frames/freqs
            out = jnp.transpose(out, (0, 2, 4, 3, 1))      # (B, NF, F, 2, C)
        else:
            out = out.reshape(B, nf_pad, 2, F_pad)
            out = out[:, :n_frames, :, :F]
            out = jnp.transpose(out, (0, 1, 3, 2))         # (B, NF, F, 2)
        return out


def _reference(x, sample_rate, win_length=25, hop_length=10, n_fft=400):
    """Independent pure-JAX replica of the torch forward via rfft (3-D path)."""
    B, T, C = x.shape
    wl = int(round(sample_rate / 1000.0 * win_length))
    hop = int(round(sample_rate / 1000.0 * hop_length))
    n = np.arange(wl)
    win = 0.54 - 0.46 * np.cos(2.0 * np.pi * n / wl)
    w_full = np.zeros(n_fft)
    left = (n_fft - wl) // 2
    w_full[left:left + wl] = win

    sig = jnp.transpose(x, (0, 2, 1)).reshape(B * C, T)
    pad = n_fft // 2
    sig = jnp.pad(sig, ((0, 0), (pad, pad)))
    n_frames = 1 + (T + 2 * pad - n_fft) // hop
    idx = np.arange(n_frames)[:, None] * hop + np.arange(n_fft)[None, :]
    frames = sig[:, idx] * jnp.asarray(w_full, jnp.float32)
    spec = jnp.fft.rfft(frames, n=n_fft, axis=-1)           # (B*C, NF, F)
    out = jnp.stack([spec.real, spec.imag], axis=-1)        # (B*C, NF, F, 2)
    F = n_fft // 2 + 1
    out = out.reshape(B, C, n_frames, F, 2)
    return jnp.transpose(out, (0, 2, 3, 4, 1)).astype(jnp.float32)


if __name__ == "__main__":
    key = jax.random.PRNGKey(0)
    sample_rate = 1600          # -> win_length = 40 samples, hop_length = 16 samples
    n_fft = 64                  # small n_fft for the toy check; F = 33
    B, T, C = 2, 256, 4
    x = jax.random.normal(key, (B, T, C), dtype=jnp.float32)

    stft = STFT(sample_rate, n_fft=n_fft)
    out = jax.block_until_ready(jax.jit(stft.__call__)(x))

    n_frames = 1 + T // stft.hop_length
    assert out.shape == (B, n_frames, stft.n_freq, 2, C), out.shape

    ref = _reference(x, sample_rate, n_fft=n_fft)
    # tolerance documents/absorbs the bf16 MXU input path + default matmul precision
    assert jnp.allclose(out, ref, atol=5e-2, rtol=5e-2), \
        float(jnp.max(jnp.abs(out - ref)))

    print("KERNEL_OK")
</pallas_src>

<mosaic_0001>
module attributes {stable_mosaic.version = 11 : i64} {
  func.func @_stft_matmul_kernel(%arg0: i32, %arg1: memref<96x64xbf16, #tpu.memory_space<vmem>>, %arg2: memref<64x256xbf16, #tpu.memory_space<vmem>>, %arg3: memref<96x256xf32, #tpu.memory_space<vmem>>) attributes {dimension_semantics = [#tpu.dimension_semantics<parallel>], iteration_bounds = array<i64: 2>, scalar_prefetch = 0 : i64, scratch_operands = 0 : i64, tpu.core_type = #tpu.core_type<tc>, window_params = [{transform_indices = @transform_0, window_bounds = array<i64: 96, 64>}, {pipeline_mode = #tpu.pipeline_mode<synchronous>, transform_indices = @transform_1, window_bounds = array<i64: 64, 256>}, {transform_indices = @transform_2, window_bounds = array<i64: 96, 256>}]} {
    %c0 = arith.constant 0 : index
    %c0_0 = arith.constant 0 : index
    %0 = vector.load %arg1[%c0, %c0_0] : memref<96x64xbf16, #tpu.memory_space<vmem>>, vector<96x64xbf16>
    %c0_1 = arith.constant 0 : index
    %c0_2 = arith.constant 0 : index
    %1 = vector.load %arg2[%c0_1, %c0_2] : memref<64x256xbf16, #tpu.memory_space<vmem>>, vector<64x256xbf16>
    %cst = arith.constant dense<0.000000e+00> : vector<96x256xf32>
    %2 = tpu.matmul %0, %1, %cst {dimension_numbers = #tpu.dot_dimension_numbers<[1], [0], [0], [1], [0, 0, 1, 1], [], []>} : vector<96x64xbf16>, vector<64x256xbf16>, vector<96x256xf32> -> vector<96x256xf32>
    %c0_3 = arith.constant 0 : index
    %c0_4 = arith.constant 0 : index
    %3 = vector.load %arg3[%c0_3, %c0_4] : memref<96x256xf32, #tpu.memory_space<vmem>>, vector<96x256xf32>
    tpu.vector_store %arg3[%c0_3, %c0_4], %2 {strides = array<i32>} : memref<96x256xf32, #tpu.memory_space<vmem>>, vector<96x256xf32>,
    return
  }
  func.func @transform_0(%arg0: i32) -> (i32, i32) {
    %c0_i32 = arith.constant 0 : i32
    %c0_i32_0 = arith.constant 0 : i32
    return %arg0, %c0_i32 : i32, i32
  }
  func.func @transform_1(%arg0: i32) -> (i32, i32) {
    %c0_i32 = arith.constant 0 : i32
    %c0_i32_0 = arith.constant 0 : i32
    %c0_i32_1 = arith.constant 0 : i32
    return %c0_i32, %c0_i32_0 : i32, i32
  }
  func.func @transform_2(%arg0: i32) -> (i32, i32) {
    %c0_i32 = arith.constant 0 : i32
    %c0_i32_0 = arith.constant 0 : i32
    return %arg0, %c0_i32 : i32, i32
  }
}

</mosaic_0001>

<llo_original>
// kernel: a_call__.1
$region0: #{a_call__.1}
  #allocation0 [shape = 'u32[]', space=smem, size = 0x4, offset = 0x4, fixed_abs, tag = 'smem constant byte address 0x4 - core index']
  #allocation1 [shape = 'u32[144,128]{1,0:T(1,128)}', space=vmem, size = 0x12000, scoped, tag = 'internal scratch']
  %s0 = inlined_call_operand.vmem [shape: bf16[192,64], index: 0, kind: input, shape index: {}]
  %s1 = inlined_call_operand.vmem [shape: bf16[64,256], index: 1, kind: input, shape index: {}]
  %s2 = inlined_call_operand.vmem [shape: f32[192,256], index: 2, kind: output, shape index: {}]
  %s3 = sld [smem:[#allocation0]]
  $region41: #{a_call__.1} parent=0
    _
  %s5 = ssub.s32 1, %s3
  %s6 = scalar_select 0, %s5, %s3
  loop: start=0, step=1, limit=4
  $region2: #{a_call__.1} parent=0 // loop_pre_header
    _
  $region3: #{a_call__.1} parent=0 // loop_header
    %s8 = sphi 0, %s12
    %p9 = scmp.ge.s32.totalorder %s8, 4
    %s18 = sphi 0, %s20
    %s21 = sphi 0, %s18
    %s22 = sphi 0, %s21
    %s38 = sphi 0, %s22
    %s42 = sphi 0, %s42
    %s44 = sphi 0, %s42
    %s45 = sphi 0, %s44
    %s59 = sphi 0, %s45
    %s65 = sphi 0, %s67
    %s68 = sphi 0, %s65
    %s69 = sphi 0, %s68
    %s85 = sphi 0, %s69
  $region4: #{a_call__.1} parent=0 // loop_header_branch
    %11 = sbr.rel (%p9) target = $region8
  $region5: #{a_call__.1} parent=0 // loop_body
    %s13 = ssub.s32 %s8, 1
    %s14 = ssub.s32 %s8, 2
    %s15 = sadd.s32 %s8, 1
    %s16 = ssub.s32 %s8, %s15
    %p17 = scmp.eq.s32.totalorder %s16, 0
    %s19 = sadd.s32 %s18, 1
    %s20 = scalar_select %p17, %s18, %s19
    %p23 = pneg %p17
    %p24 = scmp.eq.s32.totalorder %s8, 1
    %p25 = por %p23, %p24
    %p26 = scmp.ne.s32.totalorder %s18, %s21
    %p27 = scmp.eq.s32.totalorder %s8, 0
    %p28 = por %p26, %p27
    %p29 = scmp.ne.s32.totalorder %s18, %s21
    %p30 = scmp.eq.s32.totalorder %s13, 1
    %p31 = por %p29, %p30
    %p32 = scmp.ne.s32.totalorder %s21, %s22
    %p33 = scmp.eq.s32.totalorder %s13, 0
    %p34 = por %p32, %p33
    %p35 = scmp.ne.s32.totalorder %s21, %s22
    %p36 = scmp.eq.s32.totalorder %s14, 1
    %p37 = por %p35, %p36
    %p39 = scmp.ne.s32.totalorder %s22, %s38
    %p40 = scmp.eq.s32.totalorder %s14, 0
    %p41 = por %p39, %p40
    %s43 = sadd.s32 %s42, 1
    %p46 = scmp.eq.s32.totalorder %s8, 1
    %p47 = scmp.ne.s32.totalorder %s42, %s44
    %p48 = scmp.eq.s32.totalorder %s8, 0
    %p49 = por %p47, %p48
    %p50 = scmp.ne.s32.totalorder %s42, %s44
    %p51 = scmp.eq.s32.totalorder %s13, 1
    %p52 = por %p50, %p51
    %p53 = scmp.ne.s32.totalorder %s44, %s45
    %p54 = scmp.eq.s32.totalorder %s13, 0
    %p55 = por %p53, %p54
    %p56 = scmp.ne.s32.totalorder %s44, %s45
    %p57 = scmp.eq.s32.totalorder %s14, 1
    %p58 = por %p56, %p57
    %p60 = scmp.ne.s32.totalorder %s45, %s59
    %p61 = scmp.eq.s32.totalorder %s14, 0
    %p62 = por %p60, %p61
    %s63 = ssub.s32 %s8, %s15
    %p64 = scmp.eq.s32.totalorder %s63, 0
    %s66 = sadd.s32 %s65, 1
    %s67 = scalar_select %p64, %s65, %s66
    %p70 = pneg %p64
    %p71 = scmp.eq.s32.totalorder %s8, 1
    %p72 = por %p70, %p71
    %p73 = scmp.ne.s32.totalorder %s65, %s68
    %p74 = scmp.eq.s32.totalorder %s8, 0
    %p75 = por %p73, %p74
    %p76 = scmp.ne.s32.totalorder %s65, %s68
    %p77 = scmp.eq.s32.totalorder %s13, 1
    %p78 = por %p76, %p77
    %p79 = scmp.ne.s32.totalorder %s68, %s69
    %p80 = scmp.eq.s32.totalorder %s13, 0
    %p81 = por %p79, %p80
    %p82 = scmp.ne.s32.totalorder %s68, %s69
    %p83 = scmp.eq.s32.totalorder %s14, 1
    %p84 = por %p82, %p83
    %p86 = scmp.ne.s32.totalorder %s69, %s85
    %p87 = scmp.eq.s32.totalorder %s14, 0
    %p88 = por %p86, %p87
    %p89 = scmp.le.s32.totalorder 1, %s8
    %p90 = scmp.lt.s32.totalorder %s8, 3
    %p91 = pnand %p89, %p90
    %p92 = pneg %p91
    // Predicated region
    $region9: #{a_call__.1} parent=5 // pred_check
      _
    $region10: #{a_call__.1} parent=5 // pred_check_branch
      %94 = sbr.rel (%p91) target = $region12
    $region11: #{a_call__.1} parent=5 // pred_region
      %s95 = ssub.s32 %s8, 1
      // Predicated region
      $region13: #{a_call__.1} parent=11 // pred_check
        %p96 = pneg %p55
      $region14: #{a_call__.1} parent=11 // pred_check_branch
        %98 = sbr.rel (%p96) target = $region16
      $region15: #{a_call__.1} parent=11 // pred_region
        _
      $region16: #{a_call__.1} parent=11 // pred_fallthru
        _
    $region12: #{a_call__.1} parent=5 // pred_fallthru
      _
    %p99 = scmp.lt.s32.totalorder %s8, 2
    // Predicated region
    $region17: #{a_call__.1} parent=5 // pred_check
      %p100 = pneg %p99
    $region18: #{a_call__.1} parent=5 // pred_check_branch
      %102 = sbr.rel (%p100) target = $region20
    $region19: #{a_call__.1} parent=5 // pred_region
      // Predicated region
      $region21: #{a_call__.1} parent=19 // pred_check
        %p103 = pneg %p28
      $region22: #{a_call__.1} parent=19 // pred_check_branch
        %105 = sbr.rel (%p103) target = $region24
      $region23: #{a_call__.1} parent=19 // pred_region
        %s106 = smul.u32 12, %s8
        %p107 = scmp.lt.s32.totalorder %s106, 23
        %s108 = scalar_select %p107, %s106, 23
        %s109 = smul.addr %s108, 4
        %s110 = scalar_lea.vmem %s0, %s109
        %s111 = smul.u32 12, %s8
      $region24: #{a_call__.1} parent=19 // pred_fallthru
        _
    $region20: #{a_call__.1} parent=5 // pred_fallthru
      _
    %p112 = scmp.le.s32.totalorder 1, %s8
    %p113 = scmp.lt.s32.totalorder %s8, 3
    %p114 = pnand %p112, %p113
    %p115 = pneg %p114
    // Predicated region
    $region25: #{a_call__.1} parent=5 // pred_check
      _
    $region26: #{a_call__.1} parent=5 // pred_check_branch
      %117 = sbr.rel (%p114) target = $region28
    $region27: #{a_call__.1} parent=5 // pred_region
      %s118 = ssub.s32 %s8, 1
      %s119 = smul.u32 12, %s13
      %p120 = scmp.lt.s32.totalorder %s119, 23
      %s121 = scalar_select %p120, %s119, 23
      %s122 = smul.addr %s121, 4
      %s123 = scalar_lea.vmem %s0, %s122
      %p124 = pneg %p34
      %p125 = pneg %p31
      %p126 = pneg %p55
      %p127 = pneg %p52
      %p128 = pneg %p81
      %p129 = pneg %p78
      %s130 = smul.u32 12, %s13
      %p131 = scmp.lt.s32.totalorder %s130, 23
      %s132 = scalar_select %p131, %s130, 23
      %s133 = smul.addr %s132, 2
      %s134 = smul.addr %s133, 8
      %s135 = scalar_lea.vmem %s2, %s134
      %s136 = smul.u32 12, %s13
      %p137 = scmp.lt.s32.totalorder %s136, 23
      %s138 = scalar_select %p137, %s136, 23
      %s139 = smul.addr %s138, 4
      %s140 = scalar_lea.vmem %s0, %s139
      %s141 = smul.u32 12, %s13
      %s142 = smul.u32 12, %s13
      %p143 = scmp.lt.s32.totalorder %s142, 23
      %s144 = scalar_select %p143, %s142, 23
      %s145 = smul.addr %s144, 2
      %s146 = smul.addr %s145, 8
      %s147 = scalar_lea.vmem %s2, %s146
      %s148 = smul.u32 12, %s13
      %v150 = vld [vmem:[%s140] sm:$0xf]
      %v151 = vld [vmem:[%s140 + $0x4] sm:$0xf]
      %v152 = vld [vmem:[%s140 + $0x8] sm:$0xf]
      %v153 = vld [vmem:[%s140 + $0xc] sm:$0xf]
      %v154 = vld [vmem:[%s140 + $0x10] sm:$0xf]
      %v155 = vld [vmem:[%s140 + $0x14] sm:$0xf]
      %v156 = vld [vmem:[%s140 + $0x18] sm:$0xf]
      %v157 = vld [vmem:[%s140 + $0x1c] sm:$0xf]
      %v158 = vld [vmem:[%s140 + $0x20] sm:$0xf]
      %v159 = vld [vmem:[%s140 + $0x24] sm:$0xf]
      %v160 = vld [vmem:[%s140 + $0x28] sm:$0xf]
      %v161 = vld [vmem:[%s140 + $0x2c] sm:$0xf]
      %v162 = vld [vmem:[%s1] sm:$0xff]
      %v163 = vld [vmem:[%s1 + $0x8] sm:$0xff]
      %v164 = vld [vmem:[%s1 + $0x10] sm:$0xff]
      %v165 = vld [vmem:[%s1 + $0x18] sm:$0xff]
      %v166 = vld [vmem:[%s1 + $0x20] sm:$0xff]
      %v167 = vld [vmem:[%s1 + $0x28] sm:$0xff]
      %v168 = vld [vmem:[%s1 + $0x30] sm:$0xff]
      %v169 = vld [vmem:[%s1 + $0x38] sm:$0xff]
      %v182 = vunpack.c.l.b16 %v150
      %v183 = vunpack.c.l.b16 %v151
      %v184 = vunpack.c.l.b16 %v152
      %v185 = vunpack.c.l.b16 %v153
      %v186 = vunpack.c.l.b16 %v154
      %v187 = vunpack.c.l.b16 %v155
      %v188 = vunpack.c.l.b16 %v156
      %v189 = vunpack.c.l.b16 %v157
      %v190 = vunpack.c.l.b16 %v158
      %v191 = vunpack.c.l.b16 %v159
      %v192 = vunpack.c.l.b16 %v160
      %v193 = vunpack.c.l.b16 %v161
      %v194 = vpack.c.b16 %v183, %v182
      %v195 = vpack.c.b16 %v185, %v184
      %v196 = vpack.c.b16 %v187, %v186
      %v197 = vpack.c.b16 %v189, %v188
      %v198 = vpack.c.b16 %v191, %v190
      %v199 = vpack.c.b16 %v193, %v192
      %v208 = vunpack.c.l.b16 %v162
      %v209 = vunpack.c.h.b16 %v162
      %v210 = vunpack.c.l.b16 %v163
      %v211 = vunpack.c.h.b16 %v163
      %v212 = vunpack.c.l.b16 %v164
      %v213 = vunpack.c.h.b16 %v164
      %v214 = vunpack.c.l.b16 %v165
      %v215 = vunpack.c.h.b16 %v165
      %v216 = vunpack.c.l.b16 %v166
      %v217 = vunpack.c.h.b16 %v166
      %v218 = vunpack.c.l.b16 %v167
      %v219 = vunpack.c.h.b16 %v167
      %v220 = vunpack.c.l.b16 %v168
      %v221 = vunpack.c.h.b16 %v168
      %v222 = vunpack.c.l.b16 %v169
      %v223 = vunpack.c.h.b16 %v169
      %v224 = vpack.c.b16 %v210, %v208
      %v225 = vpack.c.b16 %v211, %v209
      %v226 = vpack.c.b16 %v214, %v212
      %v227 = vpack.c.b16 %v215, %v213
      %v228 = vpack.c.b16 %v218, %v216
      %v229 = vpack.c.b16 %v219, %v217
      %v230 = vpack.c.b16 %v222, %v220
      %v231 = vpack.c.b16 %v223, %v221
      %vm240 = vcmask 523264
      %v242 = vsel %vm240, %v194, 0
      %v245 = vsel %vm240, %v195, 0
      %v248 = vsel %vm240, %v196, 0
      %v251 = vsel %vm240, %v197, 0
      %v254 = vsel %vm240, %v198, 0
      %v257 = vsel %vm240, %v199, 0
      %259 = vmatprep.subr.bf16.mxu0 0
      %260 = vmatpush1.bf16.msra.mxu0 0
      %261 = vmatprep.subr.bf16.mxu0 0
      %262 = vmatpush1.bf16.msra.mxu0 0
      %263 = vmatprep.subr.bf16.mxu0 0
      %264 = vmatpush1.bf16.msra.mxu0 0
      %265 = vmatprep.subr.bf16.mxu0 0
      %266 = vmatpush1.bf16.msra.mxu0 0
      %267 = vmatprep.subr.bf16.mxu0 %v231
      %268 = vmatpush1.bf16.msra.mxu0 %v230
      %269 = vmatprep.subr.bf16.mxu0 %v229
      %270 = vmatpush1.bf16.msra.mxu0 %v228
      %271 = vmatprep.subr.bf16.mxu0 %v227
      %272 = vmatpush1.bf16.msra.mxu0 %v226
      %273 = vmatprep.subr.bf16.mxu0 %v225
      %274 = vmatpush1.bf16.msra.mxu0 %v224
      %275 = vmatprep.subr.bf16.mxu0 0
      %276 = vmatpush2.bf16.msra.mxu0 0
      %277 = vmatprep.subr.bf16.mxu0 0
      %278 = vmatpush2.bf16.msra.mxu0 0
      %279 = vmatprep.subr.bf16.mxu0 0
      %280 = vmatpush2.bf16.msra.mxu0 0
      %281 = vmatprep.subr.bf16.mxu0 0
      %282 = vmatpush2.bf16.msra.mxu0 0
      %283 = vmatprep.subr.bf16.mxu0 0
      %284 = vmatpush2.bf16.msra.mxu0 0
      %285 = vmatprep.subr.bf16.mxu0 0
      %286 = vmatpush2.bf16.msra.mxu0 0
      %287 = vmatprep.subr.bf16.mxu0 0
      %288 = vmatpush2.bf16.msra.mxu0 0
      %289 = vmatprep.subr.bf16.mxu0 0
      %290 = vmatpush2.bf16.msra.mxu0 0
      %291 = vmatprep.mubr.bf16.mxu0 0
      %292 = vmatmul.mubr.bf16.gmra.mxu0 %v242
      %v293 = vpop.f32.mrf.mxu0
      %v294 = vadd.f32 0.0, %v293
      %v295 = vpop.f32.mrf.mxu0
      %v296 = vadd.f32 0.0, %v295
      %v297 = vpop.f32.mrf.mxu0
      %v298 = vadd.f32 0.0, %v297
      %v299 = vpop.f32.mrf.mxu0
      %v300 = vadd.f32 0.0, %v299
      %301 = vmatprep.mubr.bf16.mxu0 0
      %302 = vmatmul.mubr.bf16.gmra.mxu0 %v245
      %v303 = vpop.f32.mrf.mxu0
      %v304 = vadd.f32 0.0, %v303
      %v305 = vpop.f32.mrf.mxu0
      %v306 = vadd.f32 0.0, %v305
      %v307 = vpop.f32.mrf.mxu0
      %v308 = vadd.f32 0.0, %v307
      %v309 = vpop.f32.mrf.mxu0
      %v310 = vadd.f32 0.0, %v309
      %311 = vmatprep.mubr.bf16.mxu0 0
      %312 = vmatmul.mubr.bf16.gmra.mxu0 %v248
      %v313 = vpop.f32.mrf.mxu0
      %v314 = vadd.f32 0.0, %v313
      %v315 = vpop.f32.mrf.mxu0
      %v316 = vadd.f32 0.0, %v315
      %v317 = vpop.f32.mrf.mxu0
      %v318 = vadd.f32 0.0, %v317
      %v319 = vpop.f32.mrf.mxu0
      %v320 = vadd.f32 0.0, %v319
      %321 = vmatprep.mubr.bf16.mxu0 0
      %322 = vmatmul.mubr.bf16.gmra.mxu0 %v251
      %v323 = vpop.f32.mrf.mxu0
      %v324 = vadd.f32 0.0, %v323
      %v325 = vpop.f32.mrf.mxu0
      %v326 = vadd.f32 0.0, %v325
      %v327 = vpop.f32.mrf.mxu0
      %v328 = vadd.f32 0.0, %v327
      %v329 = vpop.f32.mrf.mxu0
      %v330 = vadd.f32 0.0, %v329
      %331 = vmatprep.mubr.bf16.mxu0 0
      %332 = vmatmul.mubr.bf16.gmra.mxu0 %v254
      %v333 = vpop.f32.mrf.mxu0
      %v334 = vadd.f32 0.0, %v333
      %v335 = vpop.f32.mrf.mxu0
      %v336 = vadd.f32 0.0, %v335
      %v337 = vpop.f32.mrf.mxu0
      %v338 = vadd.f32 0.0, %v337
      %v339 = vpop.f32.mrf.mxu0
      %v340 = vadd.f32 0.0, %v339
      %341 = vmatprep.mubr.bf16.mxu0 0
      %342 = vmatmul.mubr.bf16.gmra.mxu0 %v257
      %v343 = vpop.f32.mrf.mxu0
      %v344 = vadd.f32 0.0, %v343
      %v345 = vpop.f32.mrf.mxu0
      %v346 = vadd.f32 0.0, %v345
      %v347 = vpop.f32.mrf.mxu0
      %v348 = vadd.f32 0.0, %v347
      %v349 = vpop.f32.mrf.mxu0
      %v350 = vadd.f32 0.0, %v349
      %351 = vdwg.mxu0
      %352 = vst [vmem:[%s147] sm:$0xff] %v294
      %353 = vst [vmem:[%s147 + $0x8] sm:$0xff] %v296
      %354 = vst [vmem:[%s147 + $0x10] sm:$0xff] %v298
      %355 = vst [vmem:[%s147 + $0x18] sm:$0xff] %v300
      %356 = vst [vmem:[%s147 + $0x20] sm:$0xff] %v304
      %357 = vst [vmem:[%s147 + $0x28] sm:$0xff] %v306
      %358 = vst [vmem:[%s147 + $0x30] sm:$0xff] %v308
      %359 = vst [vmem:[%s147 + $0x38] sm:$0xff] %v310
      %360 = vst [vmem:[%s147 + $0x40] sm:$0xff] %v314
      %361 = vst [vmem:[%s147 + $0x48] sm:$0xff] %v316
      %362 = vst [vmem:[%s147 + $0x50] sm:$0xff] %v318
      %363 = vst [vmem:[%s147 + $0x58] sm:$0xff] %v320
      %364 = vst [vmem:[%s147 + $0x60] sm:$0xff] %v324
      %365 = vst [vmem:[%s147 + $0x68] sm:$0xff] %v326
      %366 = vst [vmem:[%s147 + $0x70] sm:$0xff] %v328
      %367 = vst [vmem:[%s147 + $0x78] sm:$0xff] %v330
      %368 = vst [vmem:[%s147 + $0x80] sm:$0xff] %v334
      %369 = vst [vmem:[%s147 + $0x88] sm:$0xff] %v336
      %370 = vst [vmem:[%s147 + $0x90] sm:$0xff] %v338
      %371 = vst [vmem:[%s147 + $0x98] sm:$0xff] %v340
      %372 = vst [vmem:[%s147 + $0xa0] sm:$0xff] %v344
      %373 = vst [vmem:[%s147 + $0xa8] sm:$0xff] %v346
      %374 = vst [vmem:[%s147 + $0xb0] sm:$0xff] %v348
      %375 = vst [vmem:[%s147 + $0xb8] sm:$0xff] %v350
      %s376 = smul.u32 12, %s13
      %p377 = scmp.lt.s32.totalorder %s376, 23
      %s378 = scalar_select %p377, %s376, 23
      %s379 = smul.addr %s378, 2
      %s380 = smul.addr %s379, 8
      %s381 = scalar_lea.vmem %s2, %s380
      // Predicated region
      $region29: #{a_call__.1} parent=27 // pred_check
        %p382 = pneg %p78
      $region30: #{a_call__.1} parent=27 // pred_check_branch
        %384 = sbr.rel (%p382) target = $region32
      $region31: #{a_call__.1} parent=27 // pred_region
        %s385 = smul.u32 12, %s13
      $region32: #{a_call__.1} parent=27 // pred_fallthru
        _
    $region28: #{a_call__.1} parent=5 // pred_fallthru
      _
    %p386 = scmp.le.s32.totalorder 2, %s8
    // Predicated region
    $region33: #{a_call__.1} parent=5 // pred_check
      %p387 = pneg %p386
    $region34: #{a_call__.1} parent=5 // pred_check_branch
      %389 = sbr.rel (%p387) target = $region36
    $region35: #{a_call__.1} parent=5 // pred_region
      %s390 = ssub.s32 %s8, 2
      // Predicated region
      $region37: #{a_call__.1} parent=35 // pred_check
        %p391 = pneg %p84
      $region38: #{a_call__.1} parent=35 // pred_check_branch
        %393 = sbr.rel (%p391) target = $region40
      $region39: #{a_call__.1} parent=35 // pred_region
        %s394 = smul.u32 12, %s14
        %p395 = scmp.lt.s32.totalorder %s394, 23
        %s396 = scalar_select %p395, %s394, 23
        %s397 = smul.addr %s396, 2
        %s398 = smul.addr %s397, 8
        %s399 = scalar_lea.vmem %s2, %s398
      $region40: #{a_call__.1} parent=35 // pred_fallthru
        _
    $region36: #{a_call__.1} parent=5 // pred_fallthru
      _
  $region6: #{a_call__.1} parent=0 // loop_footer
    %s12 = sadd.s32 1, %s8
  $region7: #{a_call__.1} parent=0 // loop_footer_branch
    %7 = sbr.rel target = $region3
  $region8: #{a_call__.1} parent=0 // loop_exit
    _

</llo_original>
